<compile_context>
chip_gen: v5e
topology: v5e:2x2
jax: 0.10.0
libtpu: 0.0.40
codegen_flags: <defaults>
</compile_context>

<pallas_src>
import jax
import jax.numpy as jnp
from jax.experimental import pallas as pl
from jax.experimental.pallas import tpu as pltpu

LANE = 128
SUBLANE = 8
MAX_BLOCK_BYTES = 4 * 1024 * 1024    # per-input, per-buffer block footprint
CHUNK_ROWS = 512                     # rows folded into the accumulator per step
VMEM_LIMIT_BYTES = 32 * 1024 * 1024  # 16 MiB double-buffered inputs + headroom


def _round_up(v, m):
    return ((v + m - 1) // m) * m


def _make_l1_kernel(n, block_rows, chunk_rows, blocks_per_core, total_blocks,
                    ncores, compute_dtype):
    block_elems = block_rows * LANE
    full_blocks = n // block_elems        # blocks whose every element is valid
    num_chunks = block_rows // chunk_rows
    valid_full_rows = n // LANE           # 128-lane rows that are fully populated
    rem_lanes = n % LANE                  # valid lanes in the ragged last row
    # Does any grid step touch out-of-range elements (ragged tail of the last
    # real block, or beyond-the-end clamped blocks of the core split)?
    mask_possible = (ncores * blocks_per_core) > full_blocks

    def kernel(x_ref, y_ref, o_ref, acc_ref):
        c = pl.program_id(0)              # core / shard axis ("parallel")
        j = pl.program_id(1)              # streaming reduction axis ("arbitrary")
        num_j = pl.num_programs(1)

        @pl.when(j == 0)
        def _():
            acc_ref[...] = jnp.zeros_like(acc_ref)

        logical_block = c * num_j + j

        def accumulate(masked):
            # Static Python loop over row chunks keeps intermediates at
            # (chunk_rows, 128) instead of a full-block VMEM temporary.
            for ci in range(num_chunks):
                off = ci * chunk_rows
                xv = x_ref[pl.ds(off, chunk_rows), :]
                yv = y_ref[pl.ds(off, chunk_rows), :]
                d = jnp.abs(xv.astype(compute_dtype) - yv.astype(compute_dtype))
                d = d.astype(jnp.float32)
                if masked:
                    row = jax.lax.broadcasted_iota(jnp.int32, d.shape, 0)
                    grow = logical_block * block_rows + (off + row)
                    valid = grow < valid_full_rows
                    if rem_lanes:
                        lane = jax.lax.broadcasted_iota(jnp.int32, d.shape, 1)
                        valid = valid | ((grow == valid_full_rows) &
                                         (lane < rem_lanes))
                    d = jnp.where(valid, d, jnp.float32(0.0))
                # (chunk_rows, 128) -> (chunk_rows//8, 8, 128) is tile-aligned
                # and free; the axis-0 sum is plain VPU adds (no cross-lane op).
                acc_ref[...] += d.reshape(-1, SUBLANE, LANE).sum(axis=0)

        if mask_possible:
            needs_mask = logical_block >= full_blocks

            @pl.when(jnp.logical_not(needs_mask))
            def _():
                accumulate(False)

            @pl.when(needs_mask)
            def _():
                accumulate(True)
        else:
            accumulate(False)

        # Emit this core's (8, 128) partial once; the mean is a tiny epilogue.
        @pl.when(j == num_j - 1)
        def _():
            o_ref[...] = acc_ref[...]

    return kernel


def l1_loss(x, label, *, num_shards=2):
    assert x.shape == label.shape, "L1Loss expects matching shapes"
    n = x.size
    assert n > 0

    # Flatten in native dtype (no f32 upcast in HBM).
    xf = x.reshape(-1)
    yf = label.reshape(-1)

    # Fallback only when n is not 128-divisible: pad <=127 elements so the
    # lane-dense 2-D view exists.  Correctness does not rely on the pad values
    # (the in-kernel mask is per-element).
    # TODO(synk): for ragged n this pad costs a full HBM copy of both inputs.
    lane_pad = (-n) % LANE
    if lane_pad:
        xf = jnp.pad(xf, (0, lane_pad))
        yf = jnp.pad(yf, (0, lane_pad))
    rows = (n + lane_pad) // LANE
    x2 = xf.reshape(rows, LANE)
    y2 = yf.reshape(rows, LANE)

    # Block sizing: up to 4 MiB per input per buffer (8192 f32 rows / 16384
    # bf16 rows); double-buffered footprint 16 MiB fits the explicit 32 MiB
    # scoped-VMEM limit on every generation (v5e/v6e/v7x).
    itemsize = jnp.dtype(x.dtype).itemsize
    max_block_rows = max(SUBLANE,
                         _round_up(MAX_BLOCK_BYTES // (LANE * itemsize), SUBLANE))
    if rows >= max_block_rows:
        block_rows = max_block_rows
    else:
        block_rows = _round_up(rows, SUBLANE)
    chunk_rows = min(CHUNK_ROWS, block_rows)
    block_rows = _round_up(block_rows, chunk_rows)
    total_blocks = pl.cdiv(rows, block_rows)

    # Shard the stream over a leading "parallel" axis (2 TCs on v7x).  Only do
    # so when it does not create wasted clamped-block DMAs: on single-TC chips
    # this axis is a serial loop, and a clamped block is a redundant HBM fetch.
    use_shards = (total_blocks >= num_shards and
                  (total_blocks % num_shards == 0 or total_blocks >= 8))
    ncores = num_shards if use_shards else 1
    blocks_per_core = pl.cdiv(total_blocks, ncores)

    compute_dtype = jnp.bfloat16 if x.dtype == jnp.bfloat16 else jnp.float32

    def in_index_map(c, j):
        b = c * blocks_per_core + j
        # Clamp beyond-the-end logical blocks onto the last real block; the
        # kernel masks their contribution to zero.
        return (jnp.minimum(b, total_blocks - 1), 0)

    def out_index_map(c, j):
        return (c, 0)

    kernel = _make_l1_kernel(n, block_rows, chunk_rows, blocks_per_core,
                             total_blocks, ncores, compute_dtype)

    cost = pl.CostEstimate(
        flops=2 * n,
        transcendentals=0,
        bytes_accessed=2 * n * itemsize + ncores * SUBLANE * LANE * 4,
    )

    partials = pl.pallas_call(
        kernel,
        out_shape=jax.ShapeDtypeStruct((ncores * SUBLANE, LANE), jnp.float32),
        grid_spec=pltpu.PrefetchScalarGridSpec(
            num_scalar_prefetch=0,
            grid=(ncores, blocks_per_core),
            in_specs=[
                pl.BlockSpec((block_rows, LANE), in_index_map),
                pl.BlockSpec((block_rows, LANE), in_index_map),
            ],
            out_specs=pl.BlockSpec((SUBLANE, LANE), out_index_map),
            scratch_shapes=[pltpu.VMEM((SUBLANE, LANE), jnp.float32)],
        ),
        compiler_params=pltpu.CompilerParams(
            dimension_semantics=("parallel", "arbitrary"),
            vmem_limit_bytes=VMEM_LIMIT_BYTES,
        ),
        cost_estimate=cost,
    )(x2, y2)

    # Single tiny cross-lane reduce + mean outside the hot loop.
    return jnp.sum(partials) / jnp.float32(n)


if __name__ == "__main__":
    key = jax.random.PRNGKey(0)
    k1, k2 = jax.random.split(key)
    # Small NCHW-like inputs (the loss is shape-agnostic).
    x = jax.random.normal(k1, (2, 4, 16, 16), dtype=jnp.float32)
    label = jax.random.normal(k2, (2, 4, 16, 16), dtype=jnp.float32)

    loss = l1_loss(x, label)
    jax.block_until_ready(loss)

    ref = jnp.mean(jnp.abs(x - label))
    assert jnp.allclose(loss, ref, rtol=1e-5, atol=1e-6), (loss, ref)
    print("KERNEL_OK")
</pallas_src>

<mosaic_0001>
module attributes {stable_mosaic.version = 11 : i64} {
  func.func @kernel(%arg0: i32, %arg1: i32, %arg2: memref<16x128xf32, #tpu.memory_space<vmem>>, %arg3: memref<16x128xf32, #tpu.memory_space<vmem>>, %arg4: memref<8x128xf32, #tpu.memory_space<vmem>>, %arg5: memref<8x128xf32, #tpu.memory_space<vmem>>) attributes {dimension_semantics = [#tpu.dimension_semantics<parallel>, #tpu.dimension_semantics<arbitrary>], iteration_bounds = array<i64: 1, 1>, scalar_prefetch = 0 : i64, scratch_operands = 1 : i64, tpu.core_type = #tpu.core_type<tc>, window_params = [{transform_indices = @transform_0, window_bounds = array<i64: 16, 128>}, {transform_indices = @transform_1, window_bounds = array<i64: 16, 128>}, {transform_indices = @transform_2, window_bounds = array<i64: 8, 128>}]} {
    %c0_i32 = arith.constant 0 : i32
    %0 = arith.cmpi eq, %arg1, %c0_i32 : i32
    %1 = arith.extui %0 : i1 to i32
    %c0_i32_0 = arith.constant 0 : i32
    %2 = arith.cmpi ne, %1, %c0_i32_0 : i32
    scf.if %2 {
      %cst_10 = arith.constant 0.000000e+00 : f32
      %15 = vector.broadcast %cst_10 : f32 to vector<8x128xf32>
      %c0_11 = arith.constant 0 : index
      %c0_12 = arith.constant 0 : index
      %16 = vector.load %arg5[%c0_11, %c0_12] : memref<8x128xf32, #tpu.memory_space<vmem>>, vector<8x128xf32>
      tpu.vector_store %arg5[%c0_11, %c0_12], %15 {strides = array<i32>} : memref<8x128xf32, #tpu.memory_space<vmem>>, vector<8x128xf32>,
    } else {
    }
    %c0 = arith.constant 0 : index
    %c0_1 = arith.constant 0 : index
    %3 = vector.load %arg2[%c0, %c0_1] : memref<16x128xf32, #tpu.memory_space<vmem>>, vector<16x128xf32>
    %c0_2 = arith.constant 0 : index
    %c0_3 = arith.constant 0 : index
    %4 = vector.load %arg3[%c0_2, %c0_3] : memref<16x128xf32, #tpu.memory_space<vmem>>, vector<16x128xf32>
    %5 = arith.subf %3, %4 : vector<16x128xf32>
    %6 = math.absf %5 : vector<16x128xf32>
    %c0_4 = arith.constant 0 : index
    %c0_5 = arith.constant 0 : index
    %7 = vector.load %arg5[%c0_4, %c0_5] : memref<8x128xf32, #tpu.memory_space<vmem>>, vector<8x128xf32>
    %8 = vector.shape_cast %6 : vector<16x128xf32> to vector<2x8x128xf32>
    %cst = arith.constant dense<0.000000e+00> : vector<8x128xf32>
    %9 = vector.multi_reduction <add>, %8, %cst [0] : vector<2x8x128xf32> to vector<8x128xf32>
    %10 = arith.addf %7, %9 : vector<8x128xf32>
    %c0_6 = arith.constant 0 : index
    %c0_7 = arith.constant 0 : index
    %11 = vector.load %arg5[%c0_6, %c0_7] : memref<8x128xf32, #tpu.memory_space<vmem>>, vector<8x128xf32>
    tpu.vector_store %arg5[%c0_6, %c0_7], %10 {strides = array<i32>} : memref<8x128xf32, #tpu.memory_space<vmem>>, vector<8x128xf32>,
    %c0_i32_8 = arith.constant 0 : i32
    %12 = arith.cmpi eq, %arg1, %c0_i32_8 : i32
    %13 = arith.extui %12 : i1 to i32
    %c0_i32_9 = arith.constant 0 : i32
    %14 = arith.cmpi ne, %13, %c0_i32_9 : i32
    scf.if %14 {
      %c0_10 = arith.constant 0 : index
      %c0_11 = arith.constant 0 : index
      %15 = vector.load %arg5[%c0_10, %c0_11] : memref<8x128xf32, #tpu.memory_space<vmem>>, vector<8x128xf32>
      %c0_12 = arith.constant 0 : index
      %c0_13 = arith.constant 0 : index
      %16 = vector.load %arg4[%c0_12, %c0_13] : memref<8x128xf32, #tpu.memory_space<vmem>>, vector<8x128xf32>
      tpu.vector_store %arg4[%c0_12, %c0_13], %15 {strides = array<i32>} : memref<8x128xf32, #tpu.memory_space<vmem>>, vector<8x128xf32>,
    } else {
    }
    return
  }
  func.func @transform_0(%arg0: i32, %arg1: i32) -> (i32, i32) {
    %c1_i32 = arith.constant 1 : i32
    %0 = arith.muli %arg0, %c1_i32 : i32
    %1 = arith.addi %0, %arg1 : i32
    %c0_i32 = arith.constant 0 : i32
    %2 = arith.minsi %1, %c0_i32 : i32
    %c0_i32_0 = arith.constant 0 : i32
    %c0_i32_1 = arith.constant 0 : i32
    return %2, %c0_i32_0 : i32, i32
  }
  func.func @transform_1(%arg0: i32, %arg1: i32) -> (i32, i32) {
    %c1_i32 = arith.constant 1 : i32
    %0 = arith.muli %arg0, %c1_i32 : i32
    %1 = arith.addi %0, %arg1 : i32
    %c0_i32 = arith.constant 0 : i32
    %2 = arith.minsi %1, %c0_i32 : i32
    %c0_i32_0 = arith.constant 0 : i32
    %c0_i32_1 = arith.constant 0 : i32
    return %2, %c0_i32_0 : i32, i32
  }
  func.func @transform_2(%arg0: i32, %arg1: i32) -> (i32, i32) {
    %c0_i32 = arith.constant 0 : i32
    %c0_i32_0 = arith.constant 0 : i32
    return %arg0, %c0_i32 : i32, i32
  }
}

</mosaic_0001>

<llo_original>
// kernel: tpu_custom_call.1
$region0: #{tpu_custom_call.1}
  #allocation0 [shape = 'u32[]', space=smem, size = 0x4, offset = 0x4, fixed_abs, tag = 'smem constant byte address 0x4 - core index']
  #allocation1 [shape = 'u32[72,128]{1,0:T(1,128)}', space=vmem, size = 0x9000, scoped, tag = 'internal scratch']
  #allocation2 [shape = 'f32[8,128]{1,0:T(8,128)}', space=vmem, size = 0x1000, scoped, tag = 'scratch operand']
  %s0 = inlined_call_operand.hbm [shape: f32[16,128], index: 0, kind: input, shape index: {}]
  %s1 = inlined_call_operand.hbm [shape: f32[16,128], index: 1, kind: input, shape index: {}]
  %s2 = inlined_call_operand.hbm [shape: f32[8,128], index: 2, kind: output, shape index: {}]
  %s3 = sld [smem:[#allocation0]]
  $region34: #{tpu_custom_call.1} parent=0
    _
  %s5 = ssub.s32 1, %s3
  %s6 = scalar_select 0, %s5, %s3
  $region1: #{tpu_custom_call.1} parent=0
    #allocation3 [shape = 'u8[8192]{0}', space=vmem, size = 0x2000, scoped, tag = 'input window, operand 0, single buffered']
    #allocation4 [shape = 's32[1]{0}', space=sflag, size = 0x4, scoped, tag = 'scoped memory for tpu_custom_call.1']
    #allocation5 [shape = 's32[1]{0}', space=sflag, size = 0x4, scoped, tag = 'scoped memory for tpu_custom_call.1']
    #allocation6 [shape = 'u8[8192]{0}', space=vmem, size = 0x2000, scoped, tag = 'input window, operand 1, single buffered']
    #allocation7 [shape = 's32[1]{0}', space=sflag, size = 0x4, scoped, tag = 'scoped memory for tpu_custom_call.1']
    #allocation8 [shape = 'u8[4096]{0}', space=vmem, size = 0x1000, scoped, tag = 'output window, operand 0, single buffered']
    %7 = vsyncpa [#allocation4], 0
    %8 = vsyncpa [#allocation7], 0
    %9 = vsyncpa [#allocation5], 0
    // Predicated region
    $region2: #{tpu_custom_call.1} parent=1 // pred_check
      _
    $region3: #{tpu_custom_call.1} parent=1 // pred_check_branch
      %11 = sbr.rel (0) target = $region5
    $region4: #{tpu_custom_call.1} parent=1 // pred_region
      %s12 = sadd.s32 0, 0
      %p13 = scmp.lt.s32.totalorder %s12, 0
      %s14 = scalar_select %p13, %s12, 0
      %s15 = smul.u32 2, %s14
      %17 = vsyncadd [#allocation4], 0
      %s18 = smul.addr %s15, 8
      %s19 = scalar_lea.hbm %s0, %s18
      %s20 = sshll.u32 %s19, 4
      %s21 = int_to_ptr.hbm [resolvable:$true] %s20
      %s22 = sshll.u32 [#allocation3], 4
      %s23 = int_to_ptr.vmem [resolvable:$true] %s22
      %28 = dma.hbm_to_vmem [thread:$0]  %s21, 256, %s23, [#allocation4], 128, 128, 8
    $region5: #{tpu_custom_call.1} parent=1 // pred_fallthru
      _
    // Predicated region
    $region6: #{tpu_custom_call.1} parent=1 // pred_check
      _
    $region7: #{tpu_custom_call.1} parent=1 // pred_check_branch
      %30 = sbr.rel (0) target = $region9
    $region8: #{tpu_custom_call.1} parent=1 // pred_region
      %s31 = sadd.s32 0, 0
      %p32 = scmp.lt.s32.totalorder %s31, 0
      %s33 = scalar_select %p32, %s31, 0
      %s34 = smul.u32 2, %s33
      %36 = vsyncadd [#allocation7], 0
      %s37 = smul.addr %s34, 8
      %s38 = scalar_lea.hbm %s1, %s37
      %s39 = sshll.u32 %s38, 4
      %s40 = int_to_ptr.hbm [resolvable:$true] %s39
      %s41 = sshll.u32 [#allocation6], 4
      %s42 = int_to_ptr.vmem [resolvable:$true] %s41
      %47 = dma.hbm_to_vmem [thread:$0]  %s40, 256, %s42, [#allocation7], 128, 128, 8
    $region9: #{tpu_custom_call.1} parent=1 // pred_fallthru
      _
    // Predicated region
    $region10: #{tpu_custom_call.1} parent=1 // pred_check
      _
    $region11: #{tpu_custom_call.1} parent=1 // pred_check_branch
      %49 = sbr.rel (0) target = $region13
    $region12: #{tpu_custom_call.1} parent=1 // pred_region
      %51 = dma.done [#allocation4], 256
    $region13: #{tpu_custom_call.1} parent=1 // pred_fallthru
      _
    // Predicated region
    $region14: #{tpu_custom_call.1} parent=1 // pred_check
      _
    $region15: #{tpu_custom_call.1} parent=1 // pred_check_branch
      %53 = sbr.rel (0) target = $region17
    $region16: #{tpu_custom_call.1} parent=1 // pred_region
      %55 = dma.done [#allocation7], 256
    $region17: #{tpu_custom_call.1} parent=1 // pred_fallthru
      _
    %s56 = sadd.s32 0, 0
    %p57 = scmp.lt.s32.totalorder %s56, 0
    %s58 = scalar_select %p57, %s56, 0
    %s59 = smul.u32 2, %s58
    %s60 = sadd.s32 0, 0
    %p61 = scmp.lt.s32.totalorder %s60, 0
    %s62 = scalar_select %p61, %s60, 0
    %s63 = smul.u32 2, %s62
    %p64 = scmp.eq.s32.totalorder 0, 0
    // Predicated region
    $region18: #{tpu_custom_call.1} parent=1 // pred_check
      %p65 = pneg %p64
    $region19: #{tpu_custom_call.1} parent=1 // pred_check_branch
      %67 = sbr.rel (%p65) target = $region21
    $region20: #{tpu_custom_call.1} parent=1 // pred_region
      %68 = vst [vmem:[#allocation2] sm:$0xff] 0.0
    $region21: #{tpu_custom_call.1} parent=1 // pred_fallthru
      _
    %v69 = vld [vmem:[#allocation3] sm:$0xff]
    %v70 = vld [vmem:[#allocation3 + $0x8] sm:$0xff]
    %v71 = vld [vmem:[#allocation6] sm:$0xff]
    %v72 = vld [vmem:[#allocation6 + $0x8] sm:$0xff]
    %v73 = vsub.f32 %v69, %v71
    %v74 = vsub.f32 %v70, %v72
    %v75 = vand.u32 2147483647, %v73
    %v76 = vand.u32 2147483647, %v74
    %v77 = vld [vmem:[#allocation2] sm:$0xff]
    %v78 = vadd.f32 %v75, %v76
    %v79 = vadd.f32 %v77, %v78
    %80 = vst [vmem:[#allocation2] sm:$0xff] %v79
    // Predicated region
    $region22: #{tpu_custom_call.1} parent=1 // pred_check
      %p81 = pneg %p64
    $region23: #{tpu_custom_call.1} parent=1 // pred_check_branch
      %83 = sbr.rel (%p81) target = $region25
    $region24: #{tpu_custom_call.1} parent=1 // pred_region
      %v84 = vld [vmem:[#allocation2] sm:$0xff]
      %85 = vst [vmem:[#allocation8] sm:$0xff] %v84
    $region25: #{tpu_custom_call.1} parent=1 // pred_fallthru
      _
    // Predicated region
    $region26: #{tpu_custom_call.1} parent=1 // pred_check
      _
    $region27: #{tpu_custom_call.1} parent=1 // pred_check_branch
      %87 = sbr.rel (0) target = $region29
    $region28: #{tpu_custom_call.1} parent=1 // pred_region
      %89 = vsyncadd [#allocation5], 0
      %s91 = sshll.u32 [#allocation8], 4
      %s92 = int_to_ptr.vmem [resolvable:$true] %s91
      %s93 = sshll.u32 %s2, 4
      %s94 = int_to_ptr.hbm [resolvable:$true] %s93
      %96 = dma.vmem_to_hbm [thread:$0]  %s92, 128, %s94, [#allocation5]
    $region29: #{tpu_custom_call.1} parent=1 // pred_fallthru
      _
    // Predicated region
    $region30: #{tpu_custom_call.1} parent=1 // pred_check
      _
    $region31: #{tpu_custom_call.1} parent=1 // pred_check_branch
      %98 = sbr.rel (0) target = $region33
    $region32: #{tpu_custom_call.1} parent=1 // pred_region
      %100 = dma.done [#allocation5], 128
    $region33: #{tpu_custom_call.1} parent=1 // pred_fallthru
      _
    %101 = vsyncpa [#allocation4], 1
    %102 = vsyncpa [#allocation7], 1
    %103 = vsyncpa [#allocation5], 1

</llo_original>
